<compile_context>
chip_gen: v5e
topology: v5e:2x2
jax: 0.10.0
libtpu: 0.0.40
codegen_flags: <defaults>
</compile_context>

<pallas_src>
import functools

import jax
import jax.numpy as jnp
from jax.experimental import pallas as pl
from jax.experimental.pallas import tpu as pltpu

MODULE_NAMES = ["id", "img", "txt"]
EPS = 1e-10      # MutualInformationLoss epsilon
LANES = 128      # lane-dense width for the tiny (., 3) linear output


# --------------------------------------------------------------------------- #
# Kernel
# --------------------------------------------------------------------------- #
def _router_kernel(id_ref, img_ref, txt_ref, w_ref, b_ref, logits_ref,
                   acc_id, acc_img, acc_txt, *, inv_seq_len):
    """Streaming pooled-sum reduction over seq + tiny linear epilogue.

    id_ref/img_ref/txt_ref : (tB, tS, Df) f32   (seq-folded feature tiles)
    w_ref                  : (3*Df, LANES) f32  (tiled + lane-padded weight)
    b_ref                  : (1, LANES)    f32  (lane-padded bias)
    logits_ref             : (tB, LANES)   f32  output (cols >= 3 are pad)
    acc_*                  : (tB, Df)      f32  VMEM scratch accumulators
    """
    s = pl.program_id(1)

    @pl.when(s == 0)
    def _init():
        acc_id[...] = jnp.zeros_like(acc_id)
        acc_img[...] = jnp.zeros_like(acc_img)
        acc_txt[...] = jnp.zeros_like(acc_txt)

    # Partial sums over this seq tile (AdaptiveAvgPool1d(1) == mean over seq).
    acc_id[...] += jnp.sum(id_ref[...], axis=1)
    acc_img[...] += jnp.sum(img_ref[...], axis=1)
    acc_txt[...] += jnp.sum(txt_ref[...], axis=1)

    @pl.when(s == pl.num_programs(1) - 1)
    def _finalize():
        df = acc_id.shape[-1]
        w = w_ref[...]                                  # (3*Df, LANES)
        # Three small MXU calls (avoids materializing a lane-dim concat of the
        # accumulators); accumulation in f32.
        dots = (
            jnp.dot(acc_id[...], w[0:df, :],
                    preferred_element_type=jnp.float32)
            + jnp.dot(acc_img[...], w[df:2 * df, :],
                      preferred_element_type=jnp.float32)
            + jnp.dot(acc_txt[...], w[2 * df:3 * df, :],
                      preferred_element_type=jnp.float32)
        )
        # sum -> mean (divide by the ORIGINAL seq length), plus bias.
        logits_ref[...] = dots * inv_seq_len + b_ref[...]


# --------------------------------------------------------------------------- #
# Tiling helpers
# --------------------------------------------------------------------------- #
def _pick_fold(seq_len, dim, target_lanes=256):
    """Largest divisor f of seq_len with f * dim <= max(target_lanes, dim)."""
    cap = max(target_lanes, dim)
    best = 1
    for f in range(1, seq_len + 1):
        if seq_len % f == 0 and f * dim <= cap:
            best = f
    return best


def _pick_tile(n, cap, align=8):
    """Largest tile <= cap dividing n; multiple of `align` unless it's all of n."""
    if n <= cap:
        return n
    best = None
    for d in range(align, cap + 1, align):
        if n % d == 0:
            best = d
    return best if best is not None else n


# --------------------------------------------------------------------------- #
# Wrapper
# --------------------------------------------------------------------------- #
def _mutual_information_loss(phi, eps=EPS):
    """Faithful port of MutualInformationLoss (phi: (B, M, N, P))."""
    B, M, N, P = phi.shape
    flat = jax.nn.softmax(phi.reshape(B, M * N * P), axis=1)
    phi4 = flat.reshape(B, M, N, P)
    p_m = jnp.sum(phi4, axis=(2, 3))                    # (B, M)
    p_t = jnp.sum(phi4, axis=(1, 2))                    # (B, P)
    p_mt = jnp.sum(phi4, axis=2)                        # (B, M, P)
    denom = p_m[:, :, None] * p_t[:, None, :]           # (B, M, P)
    log_term = jnp.log((p_mt + eps) / (denom + eps))
    mutual_info = jnp.sum(p_mt * log_term)
    return -mutual_info


@jax.jit
def module_router_pallas(id_feat, img_feat, txt_feat, w, b):
    """Returns (logits (B, 3), mi_loss scalar)."""
    B, S, D = id_feat.shape
    assert w.shape == (3 * D, 3) and b.shape == (1, 3)

    # --- lane densification: fold f seq rows into the lane dim (free view) ----
    f = _pick_fold(S, D)
    Sf, Df = S // f, D * f
    id_f = id_feat.reshape(B, Sf, Df)
    img_f = img_feat.reshape(B, Sf, Df)
    txt_f = txt_feat.reshape(B, Sf, Df)

    # --- weights: tile each D-slice f times (matches the fold) and pad the
    #     3-wide output dim to LANES so the epilogue store is lane-dense -------
    w_id, w_img, w_txt = w[0:D], w[D:2 * D], w[2 * D:3 * D]        # (D, 3) each
    w_big = jnp.concatenate([jnp.tile(w_id, (f, 1)),
                             jnp.tile(w_img, (f, 1)),
                             jnp.tile(w_txt, (f, 1))], axis=0)     # (3*Df, 3)
    w_pad = jnp.zeros((3 * Df, LANES), w.dtype).at[:, :3].set(w_big)
    b_pad = jnp.zeros((1, LANES), b.dtype).at[:, :3].set(b)

    # --- tile sizes: keep 3 inputs x 2 pipeline buffers under ~12 MiB ---------
    tB = _pick_tile(B, 64)
    bytes_per_seq_row = 3 * 2 * tB * Df * 4
    seq_cap = max(1, (12 * 1024 * 1024) // bytes_per_seq_row)
    tS = _pick_tile(Sf, seq_cap)
    nb, ns = B // tB, Sf // tS

    grid_spec = pltpu.PrefetchScalarGridSpec(
        num_scalar_prefetch=0,
        grid=(nb, ns),
        in_specs=[
            pl.BlockSpec((tB, tS, Df), lambda bi, si: (bi, si, 0)),
            pl.BlockSpec((tB, tS, Df), lambda bi, si: (bi, si, 0)),
            pl.BlockSpec((tB, tS, Df), lambda bi, si: (bi, si, 0)),
            pl.BlockSpec((3 * Df, LANES), lambda bi, si: (0, 0)),
            pl.BlockSpec((1, LANES), lambda bi, si: (0, 0)),
        ],
        out_specs=pl.BlockSpec((tB, LANES), lambda bi, si: (bi, 0)),
        scratch_shapes=[
            pltpu.VMEM((tB, Df), jnp.float32),
            pltpu.VMEM((tB, Df), jnp.float32),
            pltpu.VMEM((tB, Df), jnp.float32),
        ],
    )

    logits_pad = pl.pallas_call(
        functools.partial(_router_kernel, inv_seq_len=1.0 / S),
        grid_spec=grid_spec,
        out_shape=jax.ShapeDtypeStruct((B, LANES), jnp.float32),
        compiler_params=pltpu.CompilerParams(
            dimension_semantics=("parallel", "arbitrary"),
            vmem_limit_bytes=32 * 1024 * 1024,
        ),
    )(id_f, img_f, txt_f, w_pad, b_pad)

    logits = logits_pad[:, :3]

    # MI loss epilogue in plain XLA (O(B*3); not worth an extra output DMA
    # stream / masked 1x1 vector store inside the kernel).
    phi = jax.nn.softmax(logits, axis=-1).reshape(B, 1, 1, 3)
    mi_loss = _mutual_information_loss(phi)
    return logits, mi_loss


def module_router_forward(id_feat, img_feat, txt_feat, w, b):
    """Full ModuleRouter.forward: returns (ranked module names, mi_loss).

    Note: producing Python strings requires one host sync (device_get of the
    argsort). For use inside a training loop, call module_router_pallas and
    keep `sorted_indices` on device instead.
    """
    logits, mi_loss = module_router_pallas(id_feat, img_feat, txt_feat, w, b)
    avg_score = jnp.mean(logits, axis=0)            # (3,)
    sorted_indices = jnp.argsort(-avg_score)        # descending
    names = [MODULE_NAMES[int(i)] for i in jax.device_get(sorted_indices)]
    return names, mi_loss


if __name__ == "__main__":
    # Small deterministic shapes: batch=2, seq=8, input_dim=32.
    B, S, D = 2, 8, 32
    key = jax.random.PRNGKey(0)
    k_id, k_img, k_txt, k_w, k_b = jax.random.split(key, 5)

    id_feat = jax.random.normal(k_id, (B, S, D), dtype=jnp.float32)
    img_feat = jax.random.normal(k_img, (B, S, D), dtype=jnp.float32)
    txt_feat = jax.random.normal(k_txt, (B, S, D), dtype=jnp.float32)

    # nn.Linear(3D, 3) parameters (PyTorch default init), stored as (3D, 3) so
    # the kernel computes x @ W + b.
    fan_in = 3 * D
    bound = 1.0 / (fan_in ** 0.5)
    w = jax.random.uniform(k_w, (3 * D, 3), minval=-bound, maxval=bound,
                           dtype=jnp.float32)
    b = jax.random.uniform(k_b, (1, 3), minval=-bound, maxval=bound,
                           dtype=jnp.float32)

    names, mi_loss = module_router_forward(id_feat, img_feat, txt_feat, w, b)
    jax.block_until_ready(mi_loss)

    # Sanity check against a plain-JAX reference of the same forward.
    pooled = [jnp.mean(x, axis=1) for x in (id_feat, img_feat, txt_feat)]
    logits_ref = jnp.concatenate(pooled, axis=-1) @ w + b
    logits_ker, mi_ker = module_router_pallas(id_feat, img_feat, txt_feat, w, b)
    assert jnp.allclose(logits_ker, logits_ref, atol=1e-4, rtol=1e-4), "logits mismatch"

    phi_ref = jax.nn.softmax(logits_ref, axis=-1).reshape(B, 1, 1, 3)
    mi_ref = _mutual_information_loss(phi_ref)
    assert jnp.allclose(mi_ker, mi_ref, atol=1e-5, rtol=1e-5), "mi_loss mismatch"

    print("KERNEL_OK")
</pallas_src>

<mosaic_0001>
module attributes {stable_mosaic.version = 11 : i64} {
  func.func @_router_kernel(%arg0: i32, %arg1: i32, %arg2: memref<2x1x256xf32, #tpu.memory_space<vmem>>, %arg3: memref<2x1x256xf32, #tpu.memory_space<vmem>>, %arg4: memref<2x1x256xf32, #tpu.memory_space<vmem>>, %arg5: memref<768x128xf32, #tpu.memory_space<vmem>>, %arg6: memref<1x128xf32, #tpu.memory_space<vmem>>, %arg7: memref<2x128xf32, #tpu.memory_space<vmem>>, %arg8: memref<2x256xf32, #tpu.memory_space<vmem>>, %arg9: memref<2x256xf32, #tpu.memory_space<vmem>>, %arg10: memref<2x256xf32, #tpu.memory_space<vmem>>) attributes {dimension_semantics = [#tpu.dimension_semantics<parallel>, #tpu.dimension_semantics<arbitrary>], iteration_bounds = array<i64: 1, 1>, scalar_prefetch = 0 : i64, scratch_operands = 3 : i64, tpu.core_type = #tpu.core_type<tc>, window_params = [{transform_indices = @transform_0, window_bounds = array<i64: 2, 1, 256>}, {transform_indices = @transform_1, window_bounds = array<i64: 2, 1, 256>}, {transform_indices = @transform_2, window_bounds = array<i64: 2, 1, 256>}, {pipeline_mode = #tpu.pipeline_mode<synchronous>, transform_indices = @transform_3, window_bounds = array<i64: 768, 128>}, {pipeline_mode = #tpu.pipeline_mode<synchronous>, transform_indices = @transform_4, window_bounds = array<i64: 1, 128>}, {transform_indices = @transform_5, window_bounds = array<i64: 2, 128>}]} {
    %c0_i32 = arith.constant 0 : i32
    %0 = arith.cmpi eq, %arg1, %c0_i32 : i32
    %1 = arith.extui %0 : i1 to i32
    %c0_i32_0 = arith.constant 0 : i32
    %2 = arith.cmpi ne, %1, %c0_i32_0 : i32
    scf.if %2 {
      %cst_25 = arith.constant 0.000000e+00 : f32
      %21 = vector.broadcast %cst_25 : f32 to vector<2x256xf32>
      %c0_26 = arith.constant 0 : index
      %c0_27 = arith.constant 0 : index
      %22 = vector.load %arg8[%c0_26, %c0_27] : memref<2x256xf32, #tpu.memory_space<vmem>>, vector<2x256xf32>
      tpu.vector_store %arg8[%c0_26, %c0_27], %21 {strides = array<i32>} : memref<2x256xf32, #tpu.memory_space<vmem>>, vector<2x256xf32>,
      %cst_28 = arith.constant 0.000000e+00 : f32
      %23 = vector.broadcast %cst_28 : f32 to vector<2x256xf32>
      %c0_29 = arith.constant 0 : index
      %c0_30 = arith.constant 0 : index
      %24 = vector.load %arg9[%c0_29, %c0_30] : memref<2x256xf32, #tpu.memory_space<vmem>>, vector<2x256xf32>
      tpu.vector_store %arg9[%c0_29, %c0_30], %23 {strides = array<i32>} : memref<2x256xf32, #tpu.memory_space<vmem>>, vector<2x256xf32>,
      %cst_31 = arith.constant 0.000000e+00 : f32
      %25 = vector.broadcast %cst_31 : f32 to vector<2x256xf32>
      %c0_32 = arith.constant 0 : index
      %c0_33 = arith.constant 0 : index
      %26 = vector.load %arg10[%c0_32, %c0_33] : memref<2x256xf32, #tpu.memory_space<vmem>>, vector<2x256xf32>
      tpu.vector_store %arg10[%c0_32, %c0_33], %25 {strides = array<i32>} : memref<2x256xf32, #tpu.memory_space<vmem>>, vector<2x256xf32>,
    } else {
    }
    %c0 = arith.constant 0 : index
    %c0_1 = arith.constant 0 : index
    %3 = vector.load %arg8[%c0, %c0_1] : memref<2x256xf32, #tpu.memory_space<vmem>>, vector<2x256xf32>
    %c0_2 = arith.constant 0 : index
    %c0_3 = arith.constant 0 : index
    %c0_4 = arith.constant 0 : index
    %4 = vector.load %arg2[%c0_2, %c0_3, %c0_4] : memref<2x1x256xf32, #tpu.memory_space<vmem>>, vector<2x1x256xf32>
    %cst = arith.constant dense<0.000000e+00> : vector<2x256xf32>
    %5 = vector.multi_reduction <add>, %4, %cst [1] : vector<2x1x256xf32> to vector<2x256xf32>
    %6 = arith.addf %3, %5 : vector<2x256xf32>
    %c0_5 = arith.constant 0 : index
    %c0_6 = arith.constant 0 : index
    %7 = vector.load %arg8[%c0_5, %c0_6] : memref<2x256xf32, #tpu.memory_space<vmem>>, vector<2x256xf32>
    tpu.vector_store %arg8[%c0_5, %c0_6], %6 {strides = array<i32>} : memref<2x256xf32, #tpu.memory_space<vmem>>, vector<2x256xf32>,
    %c0_7 = arith.constant 0 : index
    %c0_8 = arith.constant 0 : index
    %8 = vector.load %arg9[%c0_7, %c0_8] : memref<2x256xf32, #tpu.memory_space<vmem>>, vector<2x256xf32>
    %c0_9 = arith.constant 0 : index
    %c0_10 = arith.constant 0 : index
    %c0_11 = arith.constant 0 : index
    %9 = vector.load %arg3[%c0_9, %c0_10, %c0_11] : memref<2x1x256xf32, #tpu.memory_space<vmem>>, vector<2x1x256xf32>
    %cst_12 = arith.constant dense<0.000000e+00> : vector<2x256xf32>
    %10 = vector.multi_reduction <add>, %9, %cst_12 [1] : vector<2x1x256xf32> to vector<2x256xf32>
    %11 = arith.addf %8, %10 : vector<2x256xf32>
    %c0_13 = arith.constant 0 : index
    %c0_14 = arith.constant 0 : index
    %12 = vector.load %arg9[%c0_13, %c0_14] : memref<2x256xf32, #tpu.memory_space<vmem>>, vector<2x256xf32>
    tpu.vector_store %arg9[%c0_13, %c0_14], %11 {strides = array<i32>} : memref<2x256xf32, #tpu.memory_space<vmem>>, vector<2x256xf32>,
    %c0_15 = arith.constant 0 : index
    %c0_16 = arith.constant 0 : index
    %13 = vector.load %arg10[%c0_15, %c0_16] : memref<2x256xf32, #tpu.memory_space<vmem>>, vector<2x256xf32>
    %c0_17 = arith.constant 0 : index
    %c0_18 = arith.constant 0 : index
    %c0_19 = arith.constant 0 : index
    %14 = vector.load %arg4[%c0_17, %c0_18, %c0_19] : memref<2x1x256xf32, #tpu.memory_space<vmem>>, vector<2x1x256xf32>
    %cst_20 = arith.constant dense<0.000000e+00> : vector<2x256xf32>
    %15 = vector.multi_reduction <add>, %14, %cst_20 [1] : vector<2x1x256xf32> to vector<2x256xf32>
    %16 = arith.addf %13, %15 : vector<2x256xf32>
    %c0_21 = arith.constant 0 : index
    %c0_22 = arith.constant 0 : index
    %17 = vector.load %arg10[%c0_21, %c0_22] : memref<2x256xf32, #tpu.memory_space<vmem>>, vector<2x256xf32>
    tpu.vector_store %arg10[%c0_21, %c0_22], %16 {strides = array<i32>} : memref<2x256xf32, #tpu.memory_space<vmem>>, vector<2x256xf32>,
    %c0_i32_23 = arith.constant 0 : i32
    %18 = arith.cmpi eq, %arg1, %c0_i32_23 : i32
    %19 = arith.extui %18 : i1 to i32
    %c0_i32_24 = arith.constant 0 : i32
    %20 = arith.cmpi ne, %19, %c0_i32_24 : i32
    scf.if %20 {
      %c0_25 = arith.constant 0 : index
      %c0_26 = arith.constant 0 : index
      %21 = vector.load %arg5[%c0_25, %c0_26] : memref<768x128xf32, #tpu.memory_space<vmem>>, vector<768x128xf32>
      %c0_27 = arith.constant 0 : index
      %c0_28 = arith.constant 0 : index
      %22 = vector.load %arg8[%c0_27, %c0_28] : memref<2x256xf32, #tpu.memory_space<vmem>>, vector<2x256xf32>
      %23 = vector.extract_strided_slice %21 {offsets = [0, 0], sizes = [256, 128], strides = [1, 1]} : vector<768x128xf32> to vector<256x128xf32>
      %cst_29 = arith.constant dense<0.000000e+00> : vector<2x128xf32>
      %24 = tpu.matmul %22, %23, %cst_29 {dimension_numbers = #tpu.dot_dimension_numbers<[1], [0], [0], [1], [0, 0, 1, 1], [], []>} : vector<2x256xf32>, vector<256x128xf32>, vector<2x128xf32> -> vector<2x128xf32>
      %c0_30 = arith.constant 0 : index
      %c0_31 = arith.constant 0 : index
      %25 = vector.load %arg9[%c0_30, %c0_31] : memref<2x256xf32, #tpu.memory_space<vmem>>, vector<2x256xf32>
      %26 = vector.extract_strided_slice %21 {offsets = [256, 0], sizes = [256, 128], strides = [1, 1]} : vector<768x128xf32> to vector<256x128xf32>
      %cst_32 = arith.constant dense<0.000000e+00> : vector<2x128xf32>
      %27 = tpu.matmul %25, %26, %cst_32 {dimension_numbers = #tpu.dot_dimension_numbers<[1], [0], [0], [1], [0, 0, 1, 1], [], []>} : vector<2x256xf32>, vector<256x128xf32>, vector<2x128xf32> -> vector<2x128xf32>
      %28 = arith.addf %24, %27 : vector<2x128xf32>
      %c0_33 = arith.constant 0 : index
      %c0_34 = arith.constant 0 : index
      %29 = vector.load %arg10[%c0_33, %c0_34] : memref<2x256xf32, #tpu.memory_space<vmem>>, vector<2x256xf32>
      %30 = vector.extract_strided_slice %21 {offsets = [512, 0], sizes = [256, 128], strides = [1, 1]} : vector<768x128xf32> to vector<256x128xf32>
      %cst_35 = arith.constant dense<0.000000e+00> : vector<2x128xf32>
      %31 = tpu.matmul %29, %30, %cst_35 {dimension_numbers = #tpu.dot_dimension_numbers<[1], [0], [0], [1], [0, 0, 1, 1], [], []>} : vector<2x256xf32>, vector<256x128xf32>, vector<2x128xf32> -> vector<2x128xf32>
      %32 = arith.addf %28, %31 : vector<2x128xf32>
      %cst_36 = arith.constant 1.250000e-01 : f32
      %33 = vector.broadcast %cst_36 : f32 to vector<2x128xf32>
      %34 = arith.mulf %32, %33 : vector<2x128xf32>
      %c0_37 = arith.constant 0 : index
      %c0_38 = arith.constant 0 : index
      %35 = vector.load %arg6[%c0_37, %c0_38] : memref<1x128xf32, #tpu.memory_space<vmem>>, vector<1x128xf32>
      %36 = vector.broadcast %35 : vector<1x128xf32> to vector<2x128xf32>
      %37 = arith.addf %34, %36 : vector<2x128xf32>
      %c0_39 = arith.constant 0 : index
      %c0_40 = arith.constant 0 : index
      %38 = vector.load %arg7[%c0_39, %c0_40] : memref<2x128xf32, #tpu.memory_space<vmem>>, vector<2x128xf32>
      tpu.vector_store %arg7[%c0_39, %c0_40], %37 {strides = array<i32>} : memref<2x128xf32, #tpu.memory_space<vmem>>, vector<2x128xf32>,
    } else {
    }
    return
  }
  func.func @transform_0(%arg0: i32, %arg1: i32) -> (i32, i32, i32) {
    %c0_i32 = arith.constant 0 : i32
    %c0_i32_0 = arith.constant 0 : i32
    return %arg0, %arg1, %c0_i32 : i32, i32, i32
  }
  func.func @transform_1(%arg0: i32, %arg1: i32) -> (i32, i32, i32) {
    %c0_i32 = arith.constant 0 : i32
    %c0_i32_0 = arith.constant 0 : i32
    return %arg0, %arg1, %c0_i32 : i32, i32, i32
  }
  func.func @transform_2(%arg0: i32, %arg1: i32) -> (i32, i32, i32) {
    %c0_i32 = arith.constant 0 : i32
    %c0_i32_0 = arith.constant 0 : i32
    return %arg0, %arg1, %c0_i32 : i32, i32, i32
  }
  func.func @transform_3(%arg0: i32, %arg1: i32) -> (i32, i32) {
    %c0_i32 = arith.constant 0 : i32
    %c0_i32_0 = arith.constant 0 : i32
    %c0_i32_1 = arith.constant 0 : i32
    return %c0_i32, %c0_i32_0 : i32, i32
  }
  func.func @transform_4(%arg0: i32, %arg1: i32) -> (i32, i32) {
    %c0_i32 = arith.constant 0 : i32
    %c0_i32_0 = arith.constant 0 : i32
    %c0_i32_1 = arith.constant 0 : i32
    return %c0_i32, %c0_i32_0 : i32, i32
  }
  func.func @transform_5(%arg0: i32, %arg1: i32) -> (i32, i32) {
    %c0_i32 = arith.constant 0 : i32
    %c0_i32_0 = arith.constant 0 : i32
    return %arg0, %c0_i32 : i32, i32
  }
}

</mosaic_0001>

<llo_original>
// kernel: tile.19
$region0: #{tile.19}
  %s0 = inlined_call_operand.vmem [shape: f32[8,32,3], index: 0, kind: input, shape index: {}]
  %s1 = inlined_call_operand.vmem [shape: f32[256,3], index: 1, kind: output, shape index: {}]
  $region1: #{tile.19} parent=0
    #allocation0 [shape = 'u8[8192]{0}', space=vmem, size = 0x2000, scoped, tag = 'scoped mem for output reshape']
    %v2 = vld [vmem:[%s0] ss:$4 sm:$0x3f]
    %vm3 = vcmask 261120
    %4 = vst.msk [vmem:[#allocation0] ss:$8 sm:$0x3] %vm3, %v2
    %s5 = scalar_lea.vmem [#allocation0], 4294967281
    %6 = vst.msk [vmem:[%s5] ss:$8 sm:$0xc] %vm3, %v2
    %s7 = scalar_lea.vmem [#allocation0], 4294967266
    %8 = vst.msk [vmem:[%s7] ss:$8 sm:$0x30] %vm3, %v2
    %s9 = scalar_lea.vmem %s0, 3
    %v10 = vld [vmem:[%s9] ss:$8 sm:$0x7]
    %s11 = scalar_lea.vmem %s0, 4294967279
    %v12 = vld [vmem:[%s11] ss:$8 sm:$0x38]
    %vm13 = vcmask 1045507
    %v14 = vsel %vm13, %v12, %v10
    %15 = vrot.lane.b32.xlu0 %v14, 96
    %v16 = vpop.permute.xlu0 %15
    %vm17 = vcmask 1048320
    %18 = vst.msk [vmem:[#allocation0] sm:$0x7] %vm17, %v16
    %s19 = scalar_lea.vmem [#allocation0], 5
    %20 = vst.msk [vmem:[%s19] sm:$0x38] %vm17, %v16
    %s21 = scalar_lea.vmem %s0, 2
    %v22 = vld [vmem:[%s21] ss:$8 sm:$0x7]
    %s23 = scalar_lea.vmem %s0, 4294967278
    %v24 = vld [vmem:[%s23] ss:$8 sm:$0x38]
    %vm25 = vcmask 1045507
    %v26 = vsel %vm25, %v24, %v22
    %27 = vrot.lane.b32.xlu0 %v26, 64
    %v28 = vpop.permute.xlu0 %27
    %vm29 = vcmask 785920
    %30 = vst.msk [vmem:[#allocation0] sm:$0x7] %vm29, %v28
    %s31 = scalar_lea.vmem [#allocation0], 5
    %32 = vst.msk [vmem:[%s31] sm:$0x38] %vm29, %v28
    %s33 = scalar_lea.vmem %s0, 1
    %v34 = vld [vmem:[%s33] ss:$8 sm:$0x7]
    %s35 = scalar_lea.vmem %s0, 4294967277
    %v36 = vld [vmem:[%s35] ss:$8 sm:$0x38]
    %vm37 = vcmask 1045507
    %v38 = vsel %vm37, %v36, %v34
    %39 = vrot.lane.b32.xlu0 %v38, 32
    %v40 = vpop.permute.xlu0 %39
    %vm41 = vcmask 523520
    %42 = vst.msk [vmem:[#allocation0] sm:$0x7] %vm41, %v40
    %s43 = scalar_lea.vmem [#allocation0], 5
    %44 = vst.msk [vmem:[%s43] sm:$0x38] %vm41, %v40
    %s46 = ssub.s32 16, 1
    %v47 = vld [vmem:[#allocation0] sm:%s46]
    %s49 = ssub.s32 16, 1
    %50 = vst [vmem:[%s1] sm:%s49] %v47
    %s51 = scalar_lea.vmem [#allocation0], 8
    %v52 = vld [vmem:[%s51] sm:%s46]
    %s54 = ssub.s32 16, 1
    %s55 = scalar_lea.vmem %s1, 4
    %56 = vst [vmem:[%s55] sm:%s54] %v52

// kernel: module_router_pallas.1
$region0: #{module_router_pallas.1}
  #allocation0 [shape = 'u32[]', space=smem, size = 0x4, offset = 0x4, fixed_abs, tag = 'smem constant byte address 0x4 - core index']
  #allocation1 [shape = 'u32[72,128]{1,0:T(1,128)}', space=vmem, size = 0x9000, scoped, tag = 'internal scratch']
  #allocation2 [shape = 'f32[2,256]{1,0:T(2,128)}', space=vmem, size = 0x800, scoped, tag = 'scratch operand']
  #allocation3 [shape = 'f32[2,256]{1,0:T(2,128)}', space=vmem, size = 0x800, scoped, tag = 'scratch operand']
  #allocation4 [shape = 'f32[2,256]{1,0:T(2,128)}', space=vmem, size = 0x800, scoped, tag = 'scratch operand']
  %s0 = inlined_call_operand.vmem [shape: f32[2,1,256], index: 0, kind: input, shape index: {}]
  %s1 = inlined_call_operand.vmem [shape: f32[2,1,256], index: 1, kind: input, shape index: {}]
  %s2 = inlined_call_operand.vmem [shape: f32[2,1,256], index: 2, kind: input, shape index: {}]
  %s3 = inlined_call_operand.vmem [shape: f32[768,128], index: 3, kind: input, shape index: {}]
  %s4 = inlined_call_operand.vmem [shape: f32[1,128], index: 4, kind: input, shape index: {}]
  %s5 = inlined_call_operand.vmem [shape: f32[2,128], index: 5, kind: output, shape index: {}]
  %s6 = sld [smem:[#allocation0]]
  $region38: #{module_router_pallas.1} parent=0
    _
  %s8 = ssub.s32 1, %s6
  %s9 = scalar_select 0, %s8, %s6
  // Predicated region
  $region2: #{module_router_pallas.1} parent=0 // pred_check
    _
  $region3: #{module_router_pallas.1} parent=0 // pred_check_branch
    %11 = sbr.rel (0) target = $region5
  $region4: #{module_router_pallas.1} parent=0 // pred_region
    _
  $region5: #{module_router_pallas.1} parent=0 // pred_fallthru
    _
  // Predicated region
  $region6: #{module_router_pallas.1} parent=0 // pred_check
    _
  $region7: #{module_router_pallas.1} parent=0 // pred_check_branch
    %13 = sbr.rel (0) target = $region9
  $region8: #{module_router_pallas.1} parent=0 // pred_region
    _
  $region9: #{module_router_pallas.1} parent=0 // pred_fallthru
    _
  // Predicated region
  $region10: #{module_router_pallas.1} parent=0 // pred_check
    _
  $region11: #{module_router_pallas.1} parent=0 // pred_check_branch
    %15 = sbr.rel (0) target = $region13
  $region12: #{module_router_pallas.1} parent=0 // pred_region
    _
  $region13: #{module_router_pallas.1} parent=0 // pred_fallthru
    _
  // Predicated region
  $region14: #{module_router_pallas.1} parent=0 // pred_check
    _
  $region15: #{module_router_pallas.1} parent=0 // pred_check_branch
    %17 = sbr.rel (0) target = $region17
  $region16: #{module_router_pallas.1} parent=0 // pred_region
    _
  $region17: #{module_router_pallas.1} parent=0 // pred_fallthru
    _
  // Predicated region
  $region18: #{module_router_pallas.1} parent=0 // pred_check
    _
  $region19: #{module_router_pallas.1} parent=0 // pred_check_branch
    %19 = sbr.rel (0) target = $region21
  $region20: #{module_router_pallas.1} parent=0 // pred_region
    _
  $region21: #{module_router_pallas.1} parent=0 // pred_fallthru
    _
  %p20 = scmp.eq.s32.totalorder 0, 0
  // Predicated region
  $region22: #{module_router_pallas.1} parent=0 // pred_check
    %p21 = pneg %p20
  $region23: #{module_router_pallas.1} parent=0 // pred_check_branch
    %23 = sbr.rel (%p21) target = $region25
  $region24: #{module_router_pallas.1} parent=0 // pred_region
    %24 = vst [vmem:[#allocation2] sm:$0xf] 0.0
    %25 = vst [vmem:[#allocation3] sm:$0xf] 0.0
    %26 = vst [vmem:[#allocation4] sm:$0xf] 0.0
  $region25: #{module_router_pallas.1} parent=0 // pred_fallthru
    _
  %v27 = vld [vmem:[#allocation2] sm:$0xf]
  %v28 = vld [vmem:[%s0] sm:$0x3]
  %v29 = vld [vmem:[%s0 + $0x2] sm:$0x3]
  %v30 = vadd.f32 %v28, 0.0
  %v31 = vadd.f32 %v29, 0.0
  %34 = vst [vmem:[#allocation1] ss:$2 sm:$0xff] %v30
  %s35 = scalar_lea.vmem [#allocation1], 1
  %36 = vst [vmem:[%s35] ss:$2 sm:$0xff] %v31
  %v37 = vld [vmem:[#allocation1] sm:$0xff]
  %v39 = vadd.f32 %v27, %v37
  %40 = vst [vmem:[#allocation2] sm:$0xf] %v39
  %v41 = vld [vmem:[#allocation3] sm:$0xf]
  %v42 = vld [vmem:[%s1] sm:$0x3]
  %v43 = vld [vmem:[%s1 + $0x2] sm:$0x3]
  %v44 = vadd.f32 %v42, 0.0
  %v45 = vadd.f32 %v43, 0.0
  %48 = vst [vmem:[#allocation1] ss:$2 sm:$0xff] %v44
  %s49 = scalar_lea.vmem [#allocation1], 1
  %50 = vst [vmem:[%s49] ss:$2 sm:$0xff] %v45
  %v51 = vld [vmem:[#allocation1] sm:$0xff]
  %v53 = vadd.f32 %v41, %v51
  %54 = vst [vmem:[#allocation3] sm:$0xf] %v53
  %v55 = vld [vmem:[#allocation4] sm:$0xf]
  %v56 = vld [vmem:[%s2] sm:$0x3]
  %v57 = vld [vmem:[%s2 + $0x2] sm:$0x3]
  %v58 = vadd.f32 %v56, 0.0
  %v59 = vadd.f32 %v57, 0.0
  %62 = vst [vmem:[#allocation1] ss:$2 sm:$0xff] %v58
  %s63 = scalar_lea.vmem [#allocation1], 1
  %64 = vst [vmem:[%s63] ss:$2 sm:$0xff] %v59
  %v65 = vld [vmem:[#allocation1] sm:$0xff]
  %v67 = vadd.f32 %v55, %v65
  %68 = vst [vmem:[#allocation4] sm:$0xf] %v67
  // Predicated region
  $region26: #{module_router_pallas.1} parent=0 // pred_check
    %p69 = pneg %p20
  $region27: #{module_router_pallas.1} parent=0 // pred_check_branch
    %71 = sbr.rel (%p69) target = $region29
  $region28: #{module_router_pallas.1} parent=0 // pred_region
    %v72 = vld [vmem:[%s3] sm:$0xff]
    %v73 = vld [vmem:[%s3 + $0x8] sm:$0xff]
    %v74 = vld [vmem:[%s3 + $0x10] sm:$0xff]
    %v75 = vld [vmem:[%s3 + $0x18] sm:$0xff]
    %v76 = vld [vmem:[%s3 + $0x20] sm:$0xff]
    %v77 = vld [vmem:[%s3 + $0x28] sm:$0xff]
    %v78 = vld [vmem:[%s3 + $0x30] sm:$0xff]
    %v79 = vld [vmem:[%s3 + $0x38] sm:$0xff]
    %v80 = vld [vmem:[%s3 + $0x40] sm:$0xff]
    %v81 = vld [vmem:[%s3 + $0x48] sm:$0xff]
    %v82 = vld [vmem:[%s3 + $0x50] sm:$0xff]
    %v83 = vld [vmem:[%s3 + $0x58] sm:$0xff]
    %v84 = vld [vmem:[%s3 + $0x60] sm:$0xff]
    %v85 = vld [vmem:[%s3 + $0x68] sm:$0xff]
    %v86 = vld [vmem:[%s3 + $0x70] sm:$0xff]
    %v87 = vld [vmem:[%s3 + $0x78] sm:$0xff]
    %v88 = vld [vmem:[%s3 + $0x80] sm:$0xff]
    %v89 = vld [vmem:[%s3 + $0x88] sm:$0xff]
    %v90 = vld [vmem:[%s3 + $0x90] sm:$0xff]
    %v91 = vld [vmem:[%s3 + $0x98] sm:$0xff]
    %v92 = vld [vmem:[%s3 + $0xa0] sm:$0xff]
    %v93 = vld [vmem:[%s3 + $0xa8] sm:$0xff]
    %v94 = vld [vmem:[%s3 + $0xb0] sm:$0xff]
    %v95 = vld [vmem:[%s3 + $0xb8] sm:$0xff]
    %v96 = vld [vmem:[%s3 + $0xc0] sm:$0xff]
    %v97 = vld [vmem:[%s3 + $0xc8] sm:$0xff]
    %v98 = vld [vmem:[%s3 + $0xd0] sm:$0xff]
    %v99 = vld [vmem:[%s3 + $0xd8] sm:$0xff]
    %v100 = vld [vmem:[%s3 + $0xe0] sm:$0xff]
    %v101 = vld [vmem:[%s3 + $0xe8] sm:$0xff]
    %v102 = vld [vmem:[%s3 + $0xf0] sm:$0xff]
    %v103 = vld [vmem:[%s3 + $0xf8] sm:$0xff]
    %v104 = vld [vmem:[%s3 + $0x100] sm:$0xff]
    %v105 = vld [vmem:[%s3 + $0x108] sm:$0xff]
    %v106 = vld [vmem:[%s3 + $0x110] sm:$0xff]
    %v107 = vld [vmem:[%s3 + $0x118] sm:$0xff]
    %v108 = vld [vmem:[%s3 + $0x120] sm:$0xff]
    %v109 = vld [vmem:[%s3 + $0x128] sm:$0xff]
    %v110 = vld [vmem:[%s3 + $0x130] sm:$0xff]
    %v111 = vld [vmem:[%s3 + $0x138] sm:$0xff]
    %v112 = vld [vmem:[%s3 + $0x140] sm:$0xff]
    %v113 = vld [vmem:[%s3 + $0x148] sm:$0xff]
    %v114 = vld [vmem:[%s3 + $0x150] sm:$0xff]
    %v115 = vld [vmem:[%s3 + $0x158] sm:$0xff]
    %v116 = vld [vmem:[%s3 + $0x160] sm:$0xff]
    %v117 = vld [vmem:[%s3 + $0x168] sm:$0xff]
    %v118 = vld [vmem:[%s3 + $0x170] sm:$0xff]
    %v119 = vld [vmem:[%s3 + $0x178] sm:$0xff]
    %v120 = vld [vmem:[%s3 + $0x180] sm:$0xff]
    %v121 = vld [vmem:[%s3 + $0x188] sm:$0xff]
    %v122 = vld [vmem:[%s3 + $0x190] sm:$0xff]
    %v123 = vld [vmem:[%s3 + $0x198] sm:$0xff]
    %v124 = vld [vmem:[%s3 + $0x1a0] sm:$0xff]
    %v125 = vld [vmem:[%s3 + $0x1a8] sm:$0xff]
    %v126 = vld [vmem:[%s3 + $0x1b0] sm:$0xff]
    %v127 = vld [vmem:[%s3 + $0x1b8] sm:$0xff]
    %v128 = vld [vmem:[%s3 + $0x1c0] sm:$0xff]
    %v129 = vld [vmem:[%s3 + $0x1c8] sm:$0xff]
    %v130 = vld [vmem:[%s3 + $0x1d0] sm:$0xff]
    %v131 = vld [vmem:[%s3 + $0x1d8] sm:$0xff]
    %v132 = vld [vmem:[%s3 + $0x1e0] sm:$0xff]
    %v133 = vld [vmem:[%s3 + $0x1e8] sm:$0xff]
    %v134 = vld [vmem:[%s3 + $0x1f0] sm:$0xff]
    %v135 = vld [vmem:[%s3 + $0x1f8] sm:$0xff]
    %v136 = vld [vmem:[%s3 + $0x200] sm:$0xff]
    %v137 = vld [vmem:[%s3 + $0x208] sm:$0xff]
    %v138 = vld [vmem:[%s3 + $0x210] sm:$0xff]
    %v139 = vld [vmem:[%s3 + $0x218] sm:$0xff]
    %v140 = vld [vmem:[%s3 + $0x220] sm:$0xff]
    %v141 = vld [vmem:[%s3 + $0x228] sm:$0xff]
    %v142 = vld [vmem:[%s3 + $0x230] sm:$0xff]
    %v143 = vld [vmem:[%s3 + $0x238] sm:$0xff]
    %v144 = vld [vmem:[%s3 + $0x240] sm:$0xff]
    %v145 = vld [vmem:[%s3 + $0x248] sm:$0xff]
    %v146 = vld [vmem:[%s3 + $0x250] sm:$0xff]
    %v147 = vld [vmem:[%s3 + $0x258] sm:$0xff]
    %v148 = vld [vmem:[%s3 + $0x260] sm:$0xff]
    %v149 = vld [vmem:[%s3 + $0x268] sm:$0xff]
    %v150 = vld [vmem:[%s3 + $0x270] sm:$0xff]
    %v151 = vld [vmem:[%s3 + $0x278] sm:$0xff]
    %v152 = vld [vmem:[%s3 + $0x280] sm:$0xff]
    %v153 = vld [vmem:[%s3 + $0x288] sm:$0xff]
    %v154 = vld [vmem:[%s3 + $0x290] sm:$0xff]
    %v155 = vld [vmem:[%s3 + $0x298] sm:$0xff]
    %v156 = vld [vmem:[%s3 + $0x2a0] sm:$0xff]
    %v157 = vld [vmem:[%s3 + $0x2a8] sm:$0xff]
    %v158 = vld [vmem:[%s3 + $0x2b0] sm:$0xff]
    %v159 = vld [vmem:[%s3 + $0x2b8] sm:$0xff]
    %v160 = vld [vmem:[%s3 + $0x2c0] sm:$0xff]
    %v161 = vld [vmem:[%s3 + $0x2c8] sm:$0xff]
    %v162 = vld [vmem:[%s3 + $0x2d0] sm:$0xff]
    %v163 = vld [vmem:[%s3 + $0x2d8] sm:$0xff]
    %v164 = vld [vmem:[%s3 + $0x2e0] sm:$0xff]
    %v165 = vld [vmem:[%s3 + $0x2e8] sm:$0xff]
    %v166 = vld [vmem:[%s3 + $0x2f0] sm:$0xff]
    %v167 = vld [vmem:[%s3 + $0x2f8] sm:$0xff]
    %v168 = vld [vmem:[#allocation2] sm:$0xf]
    %v169 = vld [vmem:[#allocation3] sm:$0xf]
    %171 = vst [vmem:[#allocation1] ss:$4 sm:$0xff] %v169
    %v172 = vld.sshfl [vmem:[#allocation1] sm:$0xff pattern:$0x73625140]
    %v173 = vld.sshfl [vmem:[#allocation1 + $0x8] sm:$0xff pattern:$0x73625140]
    %176 = vmatpush.msra.mxu0 %v119
    %177 = vmatpush.msra.mxu0 %v118
    %178 = vmatpush.msra.mxu0 %v117
    %179 = vmatpush.msra.mxu0 %v116
    %180 = vmatpush.msra.mxu0 %v115
    %181 = vmatpush.msra.mxu0 %v114
    %182 = vmatpush.msra.mxu0 %v113
    %183 = vmatpush.msra.mxu0 %v112
    %184 = vmatpush.msra.mxu0 %v111
    %185 = vmatpush.msra.mxu0 %v110
    %186 = vmatpush.msra.mxu0 %v109
    %187 = vmatpush.msra.mxu0 %v108
    %188 = vmatpush.msra.mxu0 %v107
    %189 = vmatpush.msra.mxu0 %v106
    %190 = vmatpush.msra.mxu0 %v105
    %191 = vmatpush.msra.mxu0 %v104
    %192 = vmatmul.f32.gmra.mxu0 %v172
    %v193 = vpop.f32.mrf.mxu0
    %v194 = vadd.f32 0.0, %v193
    %195 = vdwg.mxu0
    %196 = vmatpush.msra.mxu0 %v135
    %197 = vmatpush.msra.mxu0 %v134
    %198 = vmatpush.msra.mxu0 %v133
    %199 = vmatpush.msra.mxu0 %v132
    %200 = vmatpush.msra.mxu0 %v131
    %201 = vmatpush.msra.mxu0 %v130
    %202 = vmatpush.msra.mxu0 %v129
    %203 = vmatpush.msra.mxu0 %v128
    %204 = vmatpush.msra.mxu0 %v127
    %205 = vmatpush.msra.mxu0 %v126
    %206 = vmatpush.msra.mxu0 %v125
    %207 = vmatpush.msra.mxu0 %v124
    %208 = vmatpush.msra.mxu0 %v123
    %209 = vmatpush.msra.mxu0 %v122
    %210 = vmatpush.msra.mxu0 %v121
    %211 = vmatpush.msra.mxu0 %v120
    %212 = vmatmul.f32.gmra.mxu0 %v173
    %v213 = vpop.f32.mrf.mxu0
    %v214 = vadd.f32 %v194, %v213
    %215 = vdwg.mxu0
    %217 = vst [vmem:[#allocation1] ss:$4 sm:$0xff] %v168
    %v218 = vld.sshfl [vmem:[#allocation1] sm:$0xff pattern:$0x73625140]
    %v219 = vld.sshfl [vmem:[#allocation1 + $0x8] sm:$0xff pattern:$0x73625140]
    %222 = vmatpush.msra.mxu0 %v87
    %223 = vmatpush.msra.mxu0 %v86
    %224 = vmatpush.msra.mxu0 %v85
    %225 = vmatpush.msra.mxu0 %v84
    %226 = vmatpush.msra.mxu0 %v83
    %227 = vmatpush.msra.mxu0 %v82
    %228 = vmatpush.msra.mxu0 %v81
    %229 = vmatpush.msra.mxu0 %v80
    %230 = vmatpush.msra.mxu0 %v79
    %231 = vmatpush.msra.mxu0 %v78
    %232 = vmatpush.msra.mxu0 %v77
    %233 = vmatpush.msra.mxu0 %v76
    %234 = vmatpush.msra.mxu0 %v75
    %235 = vmatpush.msra.mxu0 %v74
    %236 = vmatpush.msra.mxu0 %v73
    %237 = vmatpush.msra.mxu0 %v72
    %238 = vmatmul.f32.gmra.mxu0 %v218
    %v239 = vpop.f32.mrf.mxu0
    %v240 = vadd.f32 %v214, %v239
    %241 = vdwg.mxu0
    %242 = vmatpush.msra.mxu0 %v103
    %243 = vmatpush.msra.mxu0 %v102
    %244 = vmatpush.msra.mxu0 %v101
    %245 = vmatpush.msra.mxu0 %v100
    %246 = vmatpush.msra.mxu0 %v99
    %247 = vmatpush.msra.mxu0 %v98
    %248 = vmatpush.msra.mxu0 %v97
    %249 = vmatpush.msra.mxu0 %v96
    %250 = vmatpush.msra.mxu0 %v95
    %251 = vmatpush.msra.mxu0 %v94
    %252 = vmatpush.msra.mxu0 %v93
    %253 = vmatpush.msra.mxu0 %v92
    %254 = vmatpush.msra.mxu0 %v91
    %255 = vmatpush.msra.mxu0 %v90
    %256 = vmatpush.msra.mxu0 %v89
    %257 = vmatpush.msra.mxu0 %v88
    %258 = vmatmul.f32.gmra.mxu0 %v219
    %v259 = vpop.f32.mrf.mxu0
    %v260 = vadd.f32 %v240, %v259
    %261 = vdwg.mxu0
    %v262 = vld [vmem:[#allocation4] sm:$0xf]
    %264 = vst [vmem:[#allocation1] ss:$4 sm:$0xff] %v262
    %v265 = vld.sshfl [vmem:[#allocation1] sm:$0xff pattern:$0x73625140]
    %v266 = vld.sshfl [vmem:[#allocation1 + $0x8] sm:$0xff pattern:$0x73625140]
    %269 = vmatpush.msra.mxu0 %v151
    %270 = vmatpush.msra.mxu0 %v150
    %271 = vmatpush.msra.mxu0 %v149
    %272 = vmatpush.msra.mxu0 %v148
    %273 = vmatpush.msra.mxu0 %v147
    %274 = vmatpush.msra.mxu0 %v146
    %275 = vmatpush.msra.mxu0 %v145
    %276 = vmatpush.msra.mxu0 %v144
    %277 = vmatpush.msra.mxu0 %v143
    %278 = vmatpush.msra.mxu0 %v142
    %279 = vmatpush.msra.mxu0 %v141
    %280 = vmatpush.msra.mxu0 %v140
    %281 = vmatpush.msra.mxu0 %v139
    %282 = vmatpush.msra.mxu0 %v138
    %283 = vmatpush.msra.mxu0 %v137
    %284 = vmatpush.msra.mxu0 %v136
    %285 = vmatmul.f32.gmra.mxu0 %v265
    %v286 = vpop.f32.mrf.mxu0
    %v287 = vadd.f32 0.0, %v286
    %288 = vdwg.mxu0
    %289 = vmatpush.msra.mxu0 %v167
    %290 = vmatpush.msra.mxu0 %v166
    %291 = vmatpush.msra.mxu0 %v165
    %292 = vmatpush.msra.mxu0 %v164
    %293 = vmatpush.msra.mxu0 %v163
    %294 = vmatpush.msra.mxu0 %v162
    %295 = vmatpush.msra.mxu0 %v161
    %296 = vmatpush.msra.mxu0 %v160
    %297 = vmatpush.msra.mxu0 %v159
    %298 = vmatpush.msra.mxu0 %v158
    %299 = vmatpush.msra.mxu0 %v157
    %300 = vmatpush.msra.mxu0 %v156
    %301 = vmatpush.msra.mxu0 %v155
    %302 = vmatpush.msra.mxu0 %v154
    %303 = vmatpush.msra.mxu0 %v153
    %304 = vmatpush.msra.mxu0 %v152
    %305 = vmatmul.f32.gmra.mxu0 %v266
    %v306 = vpop.f32.mrf.mxu0
    %v307 = vadd.f32 %v287, %v306
    %308 = vdwg.mxu0
    %v309 = vadd.f32 %v260, %v307
    %v310 = vmul.f32 %v309, 0.125
    %v311 = vld [vmem:[%s4] sm:$0x1]
    %v313 = vperm.slane %v311, 0
    %v315 = vadd.f32 %v310, %v313
    %316 = vst [vmem:[%s5] sm:$0x3] %v315
  $region29: #{module_router_pallas.1} parent=0 // pred_fallthru
    _
  // Predicated region
  $region30: #{module_router_pallas.1} parent=0 // pred_check
    _
  $region31: #{module_router_pallas.1} parent=0 // pred_check_branch
    %318 = sbr.rel (0) target = $region33
  $region32: #{module_router_pallas.1} parent=0 // pred_region
    _
  $region33: #{module_router_pallas.1} parent=0 // pred_fallthru
    _
  // Predicated region
  $region34: #{module_router_pallas.1} parent=0 // pred_check
    _
  $region35: #{module_router_pallas.1} parent=0 // pred_check_branch
    %320 = sbr.rel (0) target = $region37
  $region36: #{module_router_pallas.1} parent=0 // pred_region
    _
  $region37: #{module_router_pallas.1} parent=0 // pred_fallthru
    _

</llo_original>
